<compile_context>
chip_gen: v7x
topology: tpu7x:2x2x1
jax: 0.10.0
libtpu: 0.0.40
codegen_flags: <defaults>
</compile_context>

<pallas_src>
import math

import jax
import jax.numpy as jnp
from jax import lax
from jax.experimental import pallas as pl
from jax.experimental.pallas import tpu as pltpu

# dot_general dimension numbers: contract the LAST dim of both operands,
# i.e. (m, k) x (n, k) -> (m, n)  ("B transposed" matmul, native on the MXU).
_NT_DIMS = (((1,), (1,)), ((), ()))


def _output_layer_kernel(x_ref, w_o2e_ref, b_o2e_ref, w_e2s_ref, b_e2s_ref,
                         out_ref, e_ref):
    # o2e projection: compute once per row tile (at the first candidate tile)
    # into a persistent f32 VMEM scratch, reuse for every j.
    @pl.when(pl.program_id(1) == 0)
    def _():
        e = lax.dot_general(x_ref[...], w_o2e_ref[...], _NT_DIMS,
                            preferred_element_type=jnp.float32)
        e_ref[...] = e + b_o2e_ref[...].astype(jnp.float32)

    # dropout(p=0) in eval mode is the identity -> nothing to do.
    # e2s column tile: (tm, E) x (tn, E)^T + (1, tn).  The f32 intermediate is
    # cast once to the weight dtype (mixed-precision operands, f32 MXU accum).
    e_op = e_ref[...].astype(w_e2s_ref.dtype)
    scores = lax.dot_general(e_op, w_e2s_ref[...], _NT_DIMS,
                             preferred_element_type=jnp.float32)
    out_ref[...] = (scores + b_e2s_ref[...].astype(jnp.float32)).astype(out_ref.dtype)


def _round_up(x, m):
    return pl.cdiv(x, m) * m


def output_layer_forward(x, w_o2e, b_o2e, w_e2s, b_e2s, *, tm=256, tn=512):
    """OutputLayer forward (numsoftmax=1, shared_weight=None, dropout=0).

    x:      (bsz, seqlen, hidden)
    w_o2e:  (emb,  hidden)   PyTorch (out, in) layout -- NOT transposed here
    b_o2e:  (emb,)
    w_e2s:  (ncand, emb)     PyTorch (out, in) layout
    b_e2s:  (ncand,)

    Default tiles (tm=256, tn=512) keep the working set (double-buffered x,
    W_e2s and out tiles + single f32 e-scratch) to a few MiB, comfortably
    inside v7x's 64 MiB VMEM as well as the default scoped limits on v5e/v6e.
    """
    bsz, seqlen, hidden = x.shape
    emb = w_o2e.shape[0]
    ncand = w_e2s.shape[0]
    assert w_o2e.shape == (emb, hidden)
    assert b_o2e.shape == (emb,)
    assert w_e2s.shape == (ncand, emb)
    assert b_e2s.shape == (ncand,)

    M = bsz * seqlen

    # Row tile: multiple of 8 for f32 / 16 for bf16 sublane packing.
    row_align = 16 if x.dtype == jnp.bfloat16 else 8
    tm = min(tm, _round_up(M, row_align))
    tm = max(row_align, _round_up(tm, row_align))
    # Candidate tile: lane-dense multiple of 128.
    tn = min(tn, _round_up(ncand, 128))
    tn = max(128, _round_up(tn, 128))

    Mp = _round_up(M, tm)
    Cp = _round_up(ncand, tn)

    x2d = x.reshape(M, hidden)
    if Mp != M:
        x2d = jnp.pad(x2d, ((0, Mp - M), (0, 0)))
    w_e2s_p, b_e2s_p = w_e2s, b_e2s
    if Cp != ncand:
        w_e2s_p = jnp.pad(w_e2s, ((0, Cp - ncand), (0, 0)))
        b_e2s_p = jnp.pad(b_e2s, ((0, Cp - ncand),))

    b_o2e_2d = b_o2e.reshape(1, emb)
    b_e2s_2d = b_e2s_p.reshape(1, Cp)

    grid = (Mp // tm, Cp // tn)
    out = pl.pallas_call(
        _output_layer_kernel,
        out_shape=jax.ShapeDtypeStruct((Mp, Cp), x.dtype),
        grid_spec=pltpu.PrefetchScalarGridSpec(
            num_scalar_prefetch=0,
            grid=grid,
            in_specs=[
                pl.BlockSpec((tm, hidden), lambda i, j: (i, 0)),   # x row tile
                # Grid-invariant blocks below could be single-buffered
                # (pipeline_mode=pl.Buffered(1)) to shave VMEM; kept default
                # for portability since they are small.
                pl.BlockSpec((emb, hidden), lambda i, j: (0, 0)),  # W_o2e (out,in)
                pl.BlockSpec((1, emb), lambda i, j: (0, 0)),       # b_o2e
                pl.BlockSpec((tn, emb), lambda i, j: (j, 0)),      # W_e2s col tile
                pl.BlockSpec((1, tn), lambda i, j: (0, j)),        # b_e2s col tile
            ],
            out_specs=pl.BlockSpec((tm, tn), lambda i, j: (i, j)),
            scratch_shapes=[pltpu.VMEM((tm, emb), jnp.float32)],   # e scratch
        ),
        compiler_params=pltpu.CompilerParams(
            dimension_semantics=("parallel", "arbitrary")),
    )(x2d, w_o2e, b_o2e_2d, w_e2s_p, b_e2s_2d)

    out = out[:M, :ncand]
    return out.reshape(bsz, seqlen, ncand)


def _init_linear(key, out_dim, in_dim, dtype=jnp.float32):
    """Deterministic init mimicking torch.nn.Linear defaults:
    U(-1/sqrt(in_dim), 1/sqrt(in_dim)) for both weight and bias."""
    kw, kb = jax.random.split(key)
    bound = 1.0 / math.sqrt(in_dim)
    w = jax.random.uniform(kw, (out_dim, in_dim), dtype, -bound, bound)
    b = jax.random.uniform(kb, (out_dim,), dtype, -bound, bound)
    return w, b


if __name__ == "__main__":
    # Module hyperparams (small, consistent with the forward semantics).
    bsz, seqlen = 2, 8
    hiddensize = 32
    embeddingsize = 64
    num_features = 128   # number of candidates to rank

    key = jax.random.PRNGKey(0)
    k_x, k_o2e, k_e2s = jax.random.split(key, 3)

    x = jax.random.normal(k_x, (bsz, seqlen, hiddensize), jnp.float32)
    w_o2e, b_o2e = _init_linear(k_o2e, embeddingsize, hiddensize)    # o2e Linear
    w_e2s, b_e2s = _init_linear(k_e2s, num_features, embeddingsize)  # e2s Linear

    # f32 path
    scores = output_layer_forward(x, w_o2e, b_o2e, w_e2s, b_e2s)
    scores = jax.block_until_ready(scores)

    # Reference check in plain JAX (same math as the PyTorch forward).
    e_ref = jnp.einsum("bsh,eh->bse", x, w_o2e) + b_o2e
    ref = jnp.einsum("bse,ce->bsc", e_ref, w_e2s) + b_e2s
    assert scores.shape == (bsz, seqlen, num_features)
    assert jnp.allclose(scores, ref, atol=1e-3, rtol=1e-3)

    # bf16 mixed-precision path (bf16 operands, f32 MXU accumulation).
    scores_bf16 = output_layer_forward(
        x.astype(jnp.bfloat16),
        w_o2e.astype(jnp.bfloat16), b_o2e.astype(jnp.bfloat16),
        w_e2s.astype(jnp.bfloat16), b_e2s.astype(jnp.bfloat16))
    scores_bf16 = jax.block_until_ready(scores_bf16)
    assert scores_bf16.shape == (bsz, seqlen, num_features)
    assert jnp.allclose(scores_bf16.astype(jnp.float32), ref, atol=0.15, rtol=0.15)

    # TODO(synk): numsoftmax>1 (mixture-of-softmaxes) branch and the
    # shared_weight/padding_idx==0 concat branch are not implemented here.
    print("KERNEL_OK")
</pallas_src>

<mosaic_0001>
module attributes {stable_mosaic.version = 11 : i64} {
  func.func @_output_layer_kernel(%arg0: i32, %arg1: i32, %arg2: memref<16x32xf32, #tpu.memory_space<vmem>>, %arg3: memref<64x32xf32, #tpu.memory_space<vmem>>, %arg4: memref<1x64xf32, #tpu.memory_space<vmem>>, %arg5: memref<128x64xf32, #tpu.memory_space<vmem>>, %arg6: memref<1x128xf32, #tpu.memory_space<vmem>>, %arg7: memref<16x128xf32, #tpu.memory_space<vmem>>, %arg8: memref<16x64xf32, #tpu.memory_space<vmem>>) attributes {dimension_semantics = [#tpu.dimension_semantics<parallel>, #tpu.dimension_semantics<arbitrary>], iteration_bounds = array<i64: 1, 1>, scalar_prefetch = 0 : i64, scratch_operands = 1 : i64, tpu.core_type = #tpu.core_type<tc>, window_params = [{transform_indices = @transform_0, window_bounds = array<i64: 16, 32>}, {pipeline_mode = #tpu.pipeline_mode<synchronous>, transform_indices = @transform_1, window_bounds = array<i64: 64, 32>}, {pipeline_mode = #tpu.pipeline_mode<synchronous>, transform_indices = @transform_2, window_bounds = array<i64: 1, 64>}, {transform_indices = @transform_3, window_bounds = array<i64: 128, 64>}, {transform_indices = @transform_4, window_bounds = array<i64: 1, 128>}, {transform_indices = @transform_5, window_bounds = array<i64: 16, 128>}]} {
    %c0_i32 = arith.constant 0 : i32
    %0 = arith.cmpi eq, %arg1, %c0_i32 : i32
    %1 = arith.extui %0 : i1 to i32
    %c0_i32_0 = arith.constant 0 : i32
    %2 = arith.cmpi ne, %1, %c0_i32_0 : i32
    scf.if %2 {
      %c0_8 = arith.constant 0 : index
      %c0_9 = arith.constant 0 : index
      %10 = vector.load %arg2[%c0_8, %c0_9] : memref<16x32xf32, #tpu.memory_space<vmem>>, vector<16x32xf32>
      %c0_10 = arith.constant 0 : index
      %c0_11 = arith.constant 0 : index
      %11 = vector.load %arg3[%c0_10, %c0_11] : memref<64x32xf32, #tpu.memory_space<vmem>>, vector<64x32xf32>
      %cst_12 = arith.constant dense<0.000000e+00> : vector<16x64xf32>
      %12 = tpu.matmul %10, %11, %cst_12 {dimension_numbers = #tpu.dot_dimension_numbers<[1], [1], [0], [0], [0, 0, 1, 0], [], []>} : vector<16x32xf32>, vector<64x32xf32>, vector<16x64xf32> -> vector<16x64xf32>
      %c0_13 = arith.constant 0 : index
      %c0_14 = arith.constant 0 : index
      %13 = vector.load %arg4[%c0_13, %c0_14] : memref<1x64xf32, #tpu.memory_space<vmem>>, vector<1x64xf32>
      %14 = vector.broadcast %13 : vector<1x64xf32> to vector<16x64xf32>
      %15 = arith.addf %12, %14 : vector<16x64xf32>
      %c0_15 = arith.constant 0 : index
      %c0_16 = arith.constant 0 : index
      %16 = vector.load %arg8[%c0_15, %c0_16] : memref<16x64xf32, #tpu.memory_space<vmem>>, vector<16x64xf32>
      tpu.vector_store %arg8[%c0_15, %c0_16], %15 {strides = array<i32>} : memref<16x64xf32, #tpu.memory_space<vmem>>, vector<16x64xf32>,
    } else {
    }
    %c0 = arith.constant 0 : index
    %c0_1 = arith.constant 0 : index
    %3 = vector.load %arg8[%c0, %c0_1] : memref<16x64xf32, #tpu.memory_space<vmem>>, vector<16x64xf32>
    %c0_2 = arith.constant 0 : index
    %c0_3 = arith.constant 0 : index
    %4 = vector.load %arg5[%c0_2, %c0_3] : memref<128x64xf32, #tpu.memory_space<vmem>>, vector<128x64xf32>
    %cst = arith.constant dense<0.000000e+00> : vector<16x128xf32>
    %5 = tpu.matmul %3, %4, %cst {dimension_numbers = #tpu.dot_dimension_numbers<[1], [1], [0], [0], [0, 0, 1, 0], [], []>} : vector<16x64xf32>, vector<128x64xf32>, vector<16x128xf32> -> vector<16x128xf32>
    %c0_4 = arith.constant 0 : index
    %c0_5 = arith.constant 0 : index
    %6 = vector.load %arg6[%c0_4, %c0_5] : memref<1x128xf32, #tpu.memory_space<vmem>>, vector<1x128xf32>
    %7 = vector.broadcast %6 : vector<1x128xf32> to vector<16x128xf32>
    %8 = arith.addf %5, %7 : vector<16x128xf32>
    %c0_6 = arith.constant 0 : index
    %c0_7 = arith.constant 0 : index
    %9 = vector.load %arg7[%c0_6, %c0_7] : memref<16x128xf32, #tpu.memory_space<vmem>>, vector<16x128xf32>
    tpu.vector_store %arg7[%c0_6, %c0_7], %8 {strides = array<i32>} : memref<16x128xf32, #tpu.memory_space<vmem>>, vector<16x128xf32>,
    return
  }
  func.func @transform_0(%arg0: i32, %arg1: i32) -> (i32, i32) {
    %c0_i32 = arith.constant 0 : i32
    %c0_i32_0 = arith.constant 0 : i32
    return %arg0, %c0_i32 : i32, i32
  }
  func.func @transform_1(%arg0: i32, %arg1: i32) -> (i32, i32) {
    %c0_i32 = arith.constant 0 : i32
    %c0_i32_0 = arith.constant 0 : i32
    %c0_i32_1 = arith.constant 0 : i32
    return %c0_i32, %c0_i32_0 : i32, i32
  }
  func.func @transform_2(%arg0: i32, %arg1: i32) -> (i32, i32) {
    %c0_i32 = arith.constant 0 : i32
    %c0_i32_0 = arith.constant 0 : i32
    %c0_i32_1 = arith.constant 0 : i32
    return %c0_i32, %c0_i32_0 : i32, i32
  }
  func.func @transform_3(%arg0: i32, %arg1: i32) -> (i32, i32) {
    %c0_i32 = arith.constant 0 : i32
    %c0_i32_0 = arith.constant 0 : i32
    return %arg1, %c0_i32 : i32, i32
  }
  func.func @transform_4(%arg0: i32, %arg1: i32) -> (i32, i32) {
    %c0_i32 = arith.constant 0 : i32
    %c0_i32_0 = arith.constant 0 : i32
    return %c0_i32, %arg1 : i32, i32
  }
  func.func @transform_5(%arg0: i32, %arg1: i32) -> (i32, i32) {
    %c0_i32 = arith.constant 0 : i32
    return %arg0, %arg1 : i32, i32
  }
}

</mosaic_0001>

<llo_original>
// kernel: tpu_custom_call.1
$region0: #{tpu_custom_call.1}
  #allocation0 [shape = 'u32[]', space=smem, size = 0x4, offset = 0x4, fixed_abs, tag = 'smem constant byte address 0x4 - core index']
  #allocation1 [shape = 'u32[144,128]{1,0:T(1,128)}', space=vmem, size = 0x12000, scoped, tag = 'internal scratch']
  #allocation2 [shape = 'f32[16,64]{1,0:T(8,128)}', space=vmem, size = 0x2000, scoped, tag = 'scratch operand']
  %s0 = inlined_call_operand.vmem [shape: f32[16,32], index: 0, kind: input, shape index: {}]
  %s1 = inlined_call_operand.vmem [shape: f32[64,32], index: 1, kind: input, shape index: {}]
  %s2 = inlined_call_operand.vmem [shape: f32[1,64], index: 2, kind: input, shape index: {}]
  %s3 = inlined_call_operand.vmem [shape: f32[128,64], index: 3, kind: input, shape index: {}]
  %s4 = inlined_call_operand.vmem [shape: f32[1,128], index: 4, kind: input, shape index: {}]
  %s5 = inlined_call_operand.hbm [shape: f32[16,128], index: 5, kind: output, shape index: {}]
  %s6 = sld [smem:[#allocation0]]
  $region34: #{tpu_custom_call.1} parent=0
    _
  %s8 = ssub.s32 1, %s6
  %s9 = scalar_select 0, %s8, %s6
  $region1: #{tpu_custom_call.1} parent=0
    #allocation3 [shape = 'u8[8192]{0}', space=vmem, size = 0x2000, scoped, tag = 'output window, operand 0, single buffered']
    #allocation4 [shape = 's32[1]{0}', space=sflag, size = 0x4, scoped, tag = 'scoped memory for tpu_custom_call.1']
    %10 = vsyncpa [#allocation4], 0
    // Predicated region
    $region2: #{tpu_custom_call.1} parent=1 // pred_check
      _
    $region3: #{tpu_custom_call.1} parent=1 // pred_check_branch
      %12 = sbr.rel (0) target = $region5
    $region4: #{tpu_custom_call.1} parent=1 // pred_region
      _
    $region5: #{tpu_custom_call.1} parent=1 // pred_fallthru
      _
    // Predicated region
    $region6: #{tpu_custom_call.1} parent=1 // pred_check
      _
    $region7: #{tpu_custom_call.1} parent=1 // pred_check_branch
      %14 = sbr.rel (0) target = $region9
    $region8: #{tpu_custom_call.1} parent=1 // pred_region
      _
    $region9: #{tpu_custom_call.1} parent=1 // pred_fallthru
      _
    // Predicated region
    $region10: #{tpu_custom_call.1} parent=1 // pred_check
      _
    $region11: #{tpu_custom_call.1} parent=1 // pred_check_branch
      %16 = sbr.rel (0) target = $region13
    $region12: #{tpu_custom_call.1} parent=1 // pred_region
      _
    $region13: #{tpu_custom_call.1} parent=1 // pred_fallthru
      _
    // Predicated region
    $region14: #{tpu_custom_call.1} parent=1 // pred_check
      _
    $region15: #{tpu_custom_call.1} parent=1 // pred_check_branch
      %18 = sbr.rel (0) target = $region17
    $region16: #{tpu_custom_call.1} parent=1 // pred_region
      _
    $region17: #{tpu_custom_call.1} parent=1 // pred_fallthru
      _
    // Predicated region
    $region18: #{tpu_custom_call.1} parent=1 // pred_check
      _
    $region19: #{tpu_custom_call.1} parent=1 // pred_check_branch
      %20 = sbr.rel (0) target = $region21
    $region20: #{tpu_custom_call.1} parent=1 // pred_region
      _
    $region21: #{tpu_custom_call.1} parent=1 // pred_fallthru
      _
    %p21 = scmp.eq.s32.totalorder 0, 0
    // Predicated region
    $region22: #{tpu_custom_call.1} parent=1 // pred_check
      %p22 = pneg %p21
    $region23: #{tpu_custom_call.1} parent=1 // pred_check_branch
      %24 = sbr.rel (%p22) target = $region25
    $region24: #{tpu_custom_call.1} parent=1 // pred_region
      %v25 = vld [vmem:[%s0] sm:$0xff]
      %v26 = vld [vmem:[%s0 + $0x8] sm:$0xff]
      %v27 = vld [vmem:[%s1] sm:$0xff]
      %v28 = vld [vmem:[%s1 + $0x8] sm:$0xff]
      %v29 = vld [vmem:[%s1 + $0x10] sm:$0xff]
      %v30 = vld [vmem:[%s1 + $0x18] sm:$0xff]
      %v31 = vld [vmem:[%s1 + $0x20] sm:$0xff]
      %v32 = vld [vmem:[%s1 + $0x28] sm:$0xff]
      %v33 = vld [vmem:[%s1 + $0x30] sm:$0xff]
      %v34 = vld [vmem:[%s1 + $0x38] sm:$0xff]
      %v35 = vld [vmem:[%s2] sm:$0x1]
      %v37 = vlaneseq
      %v38 = vshrl.u32 %v37, 7
      %v39 = vsub.s32 0, %v38
      %v40 = vrot.slane %v35, %v39
      %vm42 = vcmask 261120
      %v44 = vsel %vm42, %v25, 0
      %v47 = vsel %vm42, %v26, 0
      %v50 = vsel %vm42, %v27, 0
      %v53 = vsel %vm42, %v28, 0
      %v56 = vsel %vm42, %v29, 0
      %v59 = vsel %vm42, %v30, 0
      %v62 = vsel %vm42, %v31, 0
      %v65 = vsel %vm42, %v32, 0
      %v68 = vsel %vm42, %v33, 0
      %v71 = vsel %vm42, %v34, 0
      %73 = vmatprep.subr.mxu0 0.0
      %74 = vmatpush1.xpose.msra.mxu0 %v50
      %75 = vmatprep.subr.mxu0 0.0
      %76 = vmatpush1.xpose.msra.mxu0 %v53
      %77 = vmatprep.subr.mxu0 0.0
      %78 = vmatpush1.xpose.msra.mxu0 %v56
      %79 = vmatprep.subr.mxu0 0.0
      %80 = vmatpush1.xpose.msra.mxu0 %v59
      %81 = vmatprep.subr.mxu0 0.0
      %82 = vmatpush1.xpose.msra.mxu0 %v62
      %83 = vmatprep.subr.mxu0 0.0
      %84 = vmatpush1.xpose.msra.mxu0 %v65
      %85 = vmatprep.subr.mxu0 0.0
      %86 = vmatpush1.xpose.msra.mxu0 %v68
      %87 = vmatprep.subr.mxu0 0.0
      %88 = vmatpush1.xpose.msra.mxu0 %v71
      %89 = vmatprep.subr.mxu0 0.0
      %90 = vmatpush1.xpose.msra.mxu0 0.0
      %91 = vmatprep.subr.mxu0 0.0
      %92 = vmatpush1.xpose.msra.mxu0 0.0
      %93 = vmatprep.subr.mxu0 0.0
      %94 = vmatpush1.xpose.msra.mxu0 0.0
      %95 = vmatprep.subr.mxu0 0.0
      %96 = vmatpush1.xpose.msra.mxu0 0.0
      %97 = vmatprep.subr.mxu0 0.0
      %98 = vmatpush1.xpose.msra.mxu0 0.0
      %99 = vmatprep.subr.mxu0 0.0
      %100 = vmatpush1.xpose.msra.mxu0 0.0
      %101 = vmatprep.subr.mxu0 0.0
      %102 = vmatpush1.xpose.msra.mxu0 0.0
      %103 = vmatprep.subr.mxu0 0.0
      %104 = vmatpush1.xpose.msra.mxu0 0.0
      %105 = vmatprep.subr.mxu0 0.0
      %106 = vmatpush1.xpose.msra.mxu0 0.0
      %107 = vmatprep.subr.mxu0 0.0
      %108 = vmatpush1.xpose.msra.mxu0 0.0
      %109 = vmatprep.subr.mxu0 0.0
      %110 = vmatpush1.xpose.msra.mxu0 0.0
      %111 = vmatprep.subr.mxu0 0.0
      %112 = vmatpush1.xpose.msra.mxu0 0.0
      %113 = vmatprep.subr.mxu0 0.0
      %114 = vmatpush1.xpose.msra.mxu0 0.0
      %115 = vmatprep.subr.mxu0 0.0
      %116 = vmatpush1.xpose.msra.mxu0 0.0
      %117 = vmatprep.subr.mxu0 0.0
      %118 = vmatpush1.xpose.msra.mxu0 0.0
      %119 = vmatprep.subr.mxu0 0.0
      %120 = vmatpush1.xpose.msra.mxu0 0.0
      %121 = vmatprep.subr.mxu0 0.0
      %122 = vmatpush1.xpose.msra.mxu0 0.0
      %123 = vmatprep.subr.mxu0 0.0
      %124 = vmatpush1.xpose.msra.mxu0 0.0
      %125 = vmatprep.subr.mxu0 0.0
      %126 = vmatpush1.xpose.msra.mxu0 0.0
      %127 = vmatprep.subr.mxu0 0.0
      %128 = vmatpush1.xpose.msra.mxu0 0.0
      %129 = vmatprep.subr.mxu0 0.0
      %130 = vmatpush1.xpose.msra.mxu0 0.0
      %131 = vmatprep.subr.mxu0 0.0
      %132 = vmatpush1.xpose.msra.mxu0 0.0
      %133 = vmatprep.subr.mxu0 0.0
      %134 = vmatpush1.xpose.msra.mxu0 0.0
      %135 = vmatprep.subr.mxu0 0.0
      %136 = vmatpush1.xpose.msra.mxu0 0.0
      %137 = vmatprep.mubr.f32.mxu0 0.0
      %138 = vmatmul.mubr.f32.gmra.mrb[0].mxu0 %v44
      %v139 = vpop.f32.mrb[0].mxu0
      %v140 = vadd.f32 %v40, %v139
      %v141 = vpop.f32.mrb[0].mxu0
      %142 = vmatprep.mubr.f32.mxu0 0.0
      %143 = vmatmul.mubr.f32.gmra.mrb[0].mxu0 %v47
      %v144 = vpop.f32.mrb[0].mxu0
      %v145 = vadd.f32 %v40, %v144
      %v146 = vpop.f32.mrb[0].mxu0
      %147 = vdwg.mxu0
      %vm148 = vcmask 523264
      %149 = vst.msk [vmem:[#allocation2] sm:$0xff] %vm148, %v140
      %150 = vst.msk [vmem:[#allocation2 + $0x8] sm:$0xff] %vm148, %v145
    $region25: #{tpu_custom_call.1} parent=1 // pred_fallthru
      _
    %v151 = vld [vmem:[#allocation2] sm:$0xff]
    %v152 = vld [vmem:[#allocation2 + $0x8] sm:$0xff]
    %v153 = vld [vmem:[%s3] sm:$0xff]
    %v154 = vld [vmem:[%s3 + $0x8] sm:$0xff]
    %v155 = vld [vmem:[%s3 + $0x10] sm:$0xff]
    %v156 = vld [vmem:[%s3 + $0x18] sm:$0xff]
    %v157 = vld [vmem:[%s3 + $0x20] sm:$0xff]
    %v158 = vld [vmem:[%s3 + $0x28] sm:$0xff]
    %v159 = vld [vmem:[%s3 + $0x30] sm:$0xff]
    %v160 = vld [vmem:[%s3 + $0x38] sm:$0xff]
    %v161 = vld [vmem:[%s3 + $0x40] sm:$0xff]
    %v162 = vld [vmem:[%s3 + $0x48] sm:$0xff]
    %v163 = vld [vmem:[%s3 + $0x50] sm:$0xff]
    %v164 = vld [vmem:[%s3 + $0x58] sm:$0xff]
    %v165 = vld [vmem:[%s3 + $0x60] sm:$0xff]
    %v166 = vld [vmem:[%s3 + $0x68] sm:$0xff]
    %v167 = vld [vmem:[%s3 + $0x70] sm:$0xff]
    %v168 = vld [vmem:[%s3 + $0x78] sm:$0xff]
    %v169 = vld [vmem:[%s4] sm:$0x1]
    %v171 = vlaneseq
    %v172 = vshrl.u32 %v171, 7
    %v173 = vsub.s32 0, %v172
    %v174 = vrot.slane %v169, %v173
    %vm176 = vcmask 523264
    %v178 = vsel %vm176, %v151, 0
    %v181 = vsel %vm176, %v152, 0
    %v184 = vsel %vm176, %v153, 0
    %v187 = vsel %vm176, %v154, 0
    %v190 = vsel %vm176, %v155, 0
    %v193 = vsel %vm176, %v156, 0
    %v196 = vsel %vm176, %v157, 0
    %v199 = vsel %vm176, %v158, 0
    %v202 = vsel %vm176, %v159, 0
    %v205 = vsel %vm176, %v160, 0
    %v208 = vsel %vm176, %v161, 0
    %v211 = vsel %vm176, %v162, 0
    %v214 = vsel %vm176, %v163, 0
    %v217 = vsel %vm176, %v164, 0
    %v220 = vsel %vm176, %v165, 0
    %v223 = vsel %vm176, %v166, 0
    %v226 = vsel %vm176, %v167, 0
    %v229 = vsel %vm176, %v168, 0
    %231 = vmatprep.subr.mxu0 0.0
    %232 = vmatpush1.xpose.msra.mxu0 %v184
    %233 = vmatprep.subr.mxu0 0.0
    %234 = vmatpush1.xpose.msra.mxu0 %v187
    %235 = vmatprep.subr.mxu0 0.0
    %236 = vmatpush1.xpose.msra.mxu0 %v190
    %237 = vmatprep.subr.mxu0 0.0
    %238 = vmatpush1.xpose.msra.mxu0 %v193
    %239 = vmatprep.subr.mxu0 0.0
    %240 = vmatpush1.xpose.msra.mxu0 %v196
    %241 = vmatprep.subr.mxu0 0.0
    %242 = vmatpush1.xpose.msra.mxu0 %v199
    %243 = vmatprep.subr.mxu0 0.0
    %244 = vmatpush1.xpose.msra.mxu0 %v202
    %245 = vmatprep.subr.mxu0 0.0
    %246 = vmatpush1.xpose.msra.mxu0 %v205
    %247 = vmatprep.subr.mxu0 0.0
    %248 = vmatpush1.xpose.msra.mxu0 %v208
    %249 = vmatprep.subr.mxu0 0.0
    %250 = vmatpush1.xpose.msra.mxu0 %v211
    %251 = vmatprep.subr.mxu0 0.0
    %252 = vmatpush1.xpose.msra.mxu0 %v214
    %253 = vmatprep.subr.mxu0 0.0
    %254 = vmatpush1.xpose.msra.mxu0 %v217
    %255 = vmatprep.subr.mxu0 0.0
    %256 = vmatpush1.xpose.msra.mxu0 %v220
    %257 = vmatprep.subr.mxu0 0.0
    %258 = vmatpush1.xpose.msra.mxu0 %v223
    %259 = vmatprep.subr.mxu0 0.0
    %260 = vmatpush1.xpose.msra.mxu0 %v226
    %261 = vmatprep.subr.mxu0 0.0
    %262 = vmatpush1.xpose.msra.mxu0 %v229
    %263 = vmatprep.subr.mxu0 0.0
    %264 = vmatpush1.xpose.msra.mxu0 0.0
    %265 = vmatprep.subr.mxu0 0.0
    %266 = vmatpush1.xpose.msra.mxu0 0.0
    %267 = vmatprep.subr.mxu0 0.0
    %268 = vmatpush1.xpose.msra.mxu0 0.0
    %269 = vmatprep.subr.mxu0 0.0
    %270 = vmatpush1.xpose.msra.mxu0 0.0
    %271 = vmatprep.subr.mxu0 0.0
    %272 = vmatpush1.xpose.msra.mxu0 0.0
    %273 = vmatprep.subr.mxu0 0.0
    %274 = vmatpush1.xpose.msra.mxu0 0.0
    %275 = vmatprep.subr.mxu0 0.0
    %276 = vmatpush1.xpose.msra.mxu0 0.0
    %277 = vmatprep.subr.mxu0 0.0
    %278 = vmatpush1.xpose.msra.mxu0 0.0
    %279 = vmatprep.subr.mxu0 0.0
    %280 = vmatpush1.xpose.msra.mxu0 0.0
    %281 = vmatprep.subr.mxu0 0.0
    %282 = vmatpush1.xpose.msra.mxu0 0.0
    %283 = vmatprep.subr.mxu0 0.0
    %284 = vmatpush1.xpose.msra.mxu0 0.0
    %285 = vmatprep.subr.mxu0 0.0
    %286 = vmatpush1.xpose.msra.mxu0 0.0
    %287 = vmatprep.subr.mxu0 0.0
    %288 = vmatpush1.xpose.msra.mxu0 0.0
    %289 = vmatprep.subr.mxu0 0.0
    %290 = vmatpush1.xpose.msra.mxu0 0.0
    %291 = vmatprep.subr.mxu0 0.0
    %292 = vmatpush1.xpose.msra.mxu0 0.0
    %293 = vmatprep.subr.mxu0 0.0
    %294 = vmatpush1.xpose.msra.mxu0 0.0
    %295 = vmatprep.mubr.f32.mxu0 0.0
    %296 = vmatmul.mubr.f32.gmra.mrb[0].mxu0 %v178
    %v297 = vpop.f32.mrb[0].mxu0
    %v298 = vadd.f32 %v174, %v297
    %v299 = vpop.f32.mrb[0].mxu0
    %300 = vmatprep.mubr.f32.mxu0 0.0
    %301 = vmatmul.mubr.f32.gmra.mrb[0].mxu0 %v181
    %v302 = vpop.f32.mrb[0].mxu0
    %v303 = vadd.f32 %v174, %v302
    %v304 = vpop.f32.mrb[0].mxu0
    %305 = vdwg.mxu0
    %306 = vst [vmem:[#allocation3] sm:$0xff] %v298
    %307 = vst [vmem:[#allocation3 + $0x8] sm:$0xff] %v303
    // Predicated region
    $region26: #{tpu_custom_call.1} parent=1 // pred_check
      _
    $region27: #{tpu_custom_call.1} parent=1 // pred_check_branch
      %309 = sbr.rel (0) target = $region29
    $region28: #{tpu_custom_call.1} parent=1 // pred_region
      %s311 = ssub.s32 256, 256
      %312 = vsyncadd [#allocation4], %s311
      %s313 = sshll.u32 [#allocation3], 4
      %s314 = int_to_ptr.vmem [resolvable:$true] %s313
      %319 = dma.vmem_to_hbm [thread:$0]  %s314, 256, %s5, [#allocation4], 128, 128, 8
    $region29: #{tpu_custom_call.1} parent=1 // pred_fallthru
      _
    // Predicated region
    $region30: #{tpu_custom_call.1} parent=1 // pred_check
      _
    $region31: #{tpu_custom_call.1} parent=1 // pred_check_branch
      %321 = sbr.rel (0) target = $region33
    $region32: #{tpu_custom_call.1} parent=1 // pred_region
      %322 = dma.done [#allocation4], 256
    $region33: #{tpu_custom_call.1} parent=1 // pred_fallthru
      _
    %323 = vsyncpa [#allocation4], 1

</llo_original>
